<compile_context>
chip_gen: v7x
topology: tpu7x:2x2x1
jax: 0.10.0
libtpu: 0.0.40
codegen_flags: <defaults>
</compile_context>

<pallas_src>
import functools

import jax
import jax.numpy as jnp
from jax.experimental import pallas as pl
from jax.experimental.pallas import tpu as pltpu


# Tables up to this size use the dense one-hot-matmul gather (table resident in
# VMEM once, one dense store per tile); larger tables use row streaming.
_DENSE_GATHER_TABLE_BYTES = 4 * 1024 * 1024


def _round_up(n, m):
    return ((n + m - 1) // m) * m


def _sublane_multiple(dtype):
    # Packed sub-32-bit dtypes need 16 (bf16) / 32 (int8, fp8) row multiples.
    return max(8, 32 // dtype.itemsize)


# ------------------------------- kernels -----------------------------------

def _contig_copy_kernel(start_blk_ref, table_ref, out_ref):
    """Contiguous positional lookup: the BlockSpec index_map (driven by the
    scalar-prefetched, bs-aligned start block) already selected the right
    (bs, dim) table tile, so the body is a pure lane/sublane-dense copy."""
    del start_blk_ref
    out_ref[...] = table_ref[...]


def _dense_gather_kernel(ids_ref, table_ref, out_ref, *, max_len):
    """Gather bs rows at once: one-hot (bs, max_len) @ table -> one dense store."""
    ids = ids_ref[...]                                        # (bs, 1) int32
    pos = jax.lax.broadcasted_iota(jnp.int32, (ids.shape[0], max_len), 1)
    onehot = (pos == ids).astype(table_ref.dtype)             # exactly one 1 per row
    out_ref[...] = jnp.dot(
        onehot, table_ref[...], preferred_element_type=jnp.float32
    ).astype(out_ref.dtype)


def _row_stream_kernel(ids_ref, row_ref, out_ref):
    """Row-streaming gather: table row already chosen by the data-dependent
    index_map (from the scalar-prefetched ids); just copy it out."""
    del ids_ref
    out_ref[...] = row_ref[...]


# ------------------------------- wrappers ----------------------------------

def positional_slice(table, start_time, seq_len):
    """table[start_time : start_time + seq_len] via a tiled Pallas copy kernel."""
    max_len, dim = table.shape
    assert seq_len <= max_len, "sequence longer than the position table"
    itemsize = table.dtype.itemsize
    sub = _sublane_multiple(table.dtype)

    # ~512-row tiles sit near the HBM roofline; never bigger than needed.
    bs = _round_up(min(512, _round_up(seq_len, sub)), sub)
    max_blocks = pl.cdiv(max_len, bs)
    # Worst-case block count covering an unaligned [start, start+seq_len) window.
    n_blocks = min(pl.cdiv(seq_len + bs - 1, bs), max_blocks)

    start = jnp.asarray(start_time, jnp.int32)
    # bs-aligned start block, clamped so every fetched block index stays inside
    # the table.  (The table's own last block may be partial -> Pallas pads it;
    # padded rows are never inside the valid output window.)
    start_blk = jnp.clip(start // bs, 0, max_blocks - n_blocks)
    offset = start - start_blk * bs

    out = pl.pallas_call(
        _contig_copy_kernel,
        out_shape=jax.ShapeDtypeStruct((n_blocks * bs, dim), table.dtype),
        grid_spec=pltpu.PrefetchScalarGridSpec(
            num_scalar_prefetch=1,
            grid=(n_blocks,),
            # Per-step (bs, dim) tile, data-dependent block index -> HBM read
            # is O(seq_len * dim), VMEM is O(bs * dim) (no resident table).
            in_specs=[pl.BlockSpec((bs, dim), lambda i, s: (s[0] + i, 0))],
            out_specs=pl.BlockSpec((bs, dim), lambda i, s: (i, 0)),
        ),
        compiler_params=pltpu.CompilerParams(dimension_semantics=("parallel",)),
        cost_estimate=pl.CostEstimate(
            flops=0, transcendentals=0,
            bytes_accessed=2 * n_blocks * bs * dim * itemsize),
    )(jnp.reshape(start_blk, (1,)), table)

    return jax.lax.dynamic_slice_in_dim(out, offset, seq_len, axis=0)


def _dense_gather(table, ids):
    """table[ids] via per-tile one-hot matmul; table resident in VMEM once."""
    max_len, dim = table.shape
    sub = _sublane_multiple(table.dtype)
    n = ids.shape[0]
    bs = _round_up(min(128, _round_up(n, sub)), sub)
    n_pad = _round_up(n, bs)
    ids_pad = jnp.zeros((n_pad, 1), jnp.int32).at[:n, 0].set(ids)

    out = pl.pallas_call(
        functools.partial(_dense_gather_kernel, max_len=max_len),
        out_shape=jax.ShapeDtypeStruct((n_pad, dim), table.dtype),
        grid_spec=pltpu.PrefetchScalarGridSpec(
            num_scalar_prefetch=0,
            grid=(n_pad // bs,),
            in_specs=[
                pl.BlockSpec((bs, 1), lambda i: (i, 0)),
                # Constant block index -> the (size-guarded) table is DMA'd once.
                pl.BlockSpec((max_len, dim), lambda i: (0, 0)),
            ],
            out_specs=pl.BlockSpec((bs, dim), lambda i: (i, 0)),
        ),
        # "arbitrary": avoid duplicating the resident table on both TensorCores.
        compiler_params=pltpu.CompilerParams(dimension_semantics=("arbitrary",)),
    )(ids_pad, table)
    return out[:n]


def _row_stream_gather(table, ids):
    """table[ids] with O(dim) VMEM: the table row is selected per grid step by a
    data-dependent index_map driven by the scalar-prefetched id vector."""
    # TODO(synk): for very large tables *and* very long id lists, a manual
    # double-buffered DMA gather (paged-attention pattern) would amortize the
    # per-row grid-step overhead better than this row-streaming BlockSpec.
    max_len, dim = table.shape
    n = ids.shape[0]
    table3 = table.reshape(max_len, 1, dim)   # (1, dim) = full last-two dims
    out = pl.pallas_call(
        _row_stream_kernel,
        out_shape=jax.ShapeDtypeStruct((n, 1, dim), table.dtype),
        grid_spec=pltpu.PrefetchScalarGridSpec(
            num_scalar_prefetch=1,
            grid=(n,),
            in_specs=[pl.BlockSpec((1, 1, dim), lambda i, ids_ref: (ids_ref[i], 0, 0))],
            out_specs=pl.BlockSpec((1, 1, dim), lambda i, ids_ref: (i, 0, 0)),
        ),
        compiler_params=pltpu.CompilerParams(dimension_semantics=("arbitrary",)),
    )(ids, table3)
    return out.reshape(n, dim)


def embedding_gather(table, ids):
    """table[ids] for an arbitrary 1-D int id vector (out-of-range ids clamped)."""
    max_len, dim = table.shape
    ids = jnp.clip(jnp.asarray(ids, jnp.int32), 0, max_len - 1)
    table_bytes = max_len * dim * table.dtype.itemsize
    if table_bytes <= _DENSE_GATHER_TABLE_BYTES:
        return _dense_gather(table, ids)
    return _row_stream_gather(table, ids)


def nn_embedding_encoding(position_table, x, start_time=0):
    """Pallas equivalent of NNEmbeddingEncoding.forward.

    position_table: (max_len, dim) — the nn.Embedding weight.
    """
    if isinstance(x, int):
        return embedding_gather(position_table, jnp.asarray([x], jnp.int32))
    x = jnp.asarray(x)
    if x.ndim == 1:
        # Explicit position ids; start_time ignored, as in the PyTorch module.
        return embedding_gather(position_table, x)
    # x is (batch, seq, ...): positions = arange(seq) + start_time (contiguous).
    return positional_slice(position_table, start_time, x.shape[1])


# --------------------------------- demo -------------------------------------

if __name__ == "__main__":
    MAX_LEN, DIM = 64, 128  # lane-dense dim (multiple of 128)
    key = jax.random.PRNGKey(0)
    wkey, xkey = jax.random.split(key)
    table = jax.random.normal(wkey, (MAX_LEN, DIM), jnp.float32)  # Embedding weight

    # Branch 1: x is a (B, S) tensor -> positions = arange(S) + start_time
    x = jax.random.randint(xkey, (2, 16), 0, 1000)
    out_main = jax.block_until_ready(nn_embedding_encoding(table, x, start_time=3))
    assert out_main.shape == (16, DIM), out_main.shape
    assert jnp.allclose(out_main, table[jnp.arange(16) + 3]), "main branch mismatch"

    # Branch 1, window near the end of the table (regression for old clamp bug).
    x_tail = jnp.zeros((1, 5), jnp.int32)
    out_tail = jax.block_until_ready(nn_embedding_encoding(table, x_tail, start_time=57))
    assert out_tail.shape == (5, DIM), out_tail.shape
    assert jnp.allclose(out_tail, table[57:62]), "tail window mismatch"

    # Branch 2: x is a 1-D tensor of explicit position ids (dense-gather path).
    ids = jnp.array([5, 1, 63, 0, 7, 2, 9, 11], dtype=jnp.int32)
    out_1d = jax.block_until_ready(nn_embedding_encoding(table, ids))
    assert out_1d.shape == (8, DIM), out_1d.shape
    assert jnp.allclose(out_1d, table[ids]), "1d branch mismatch"

    # Row-streaming gather path (used automatically for large tables).
    out_rs = jax.block_until_ready(_row_stream_gather(table, ids))
    assert jnp.allclose(out_rs, table[ids]), "row-stream gather mismatch"

    # Branch 3: x is a python int.
    out_int = jax.block_until_ready(nn_embedding_encoding(table, 7))
    assert out_int.shape == (1, DIM), out_int.shape
    assert jnp.allclose(out_int, table[7:8]), "int branch mismatch"

    print("KERNEL_OK")
</pallas_src>

<mosaic_0001>
module attributes {stable_mosaic.version = 11 : i64} {
  func.func @_contig_copy_kernel(%arg0: i32, %arg1: memref<1xi32, #tpu.memory_space<smem>>, %arg2: memref<16x128xf32, #tpu.memory_space<vmem>>, %arg3: memref<16x128xf32, #tpu.memory_space<vmem>>) attributes {dimension_semantics = [#tpu.dimension_semantics<parallel>], iteration_bounds = array<i64: 2>, scalar_prefetch = 1 : i64, scratch_operands = 0 : i64, tpu.core_type = #tpu.core_type<tc>, window_params = [{transform_indices = @transform_0, window_bounds = array<i64: 16, 128>}, {transform_indices = @transform_1, window_bounds = array<i64: 16, 128>}]} {
    %c0 = arith.constant 0 : index
    %c0_0 = arith.constant 0 : index
    %0 = vector.load %arg2[%c0, %c0_0] : memref<16x128xf32, #tpu.memory_space<vmem>>, vector<16x128xf32>
    %c0_1 = arith.constant 0 : index
    %c0_2 = arith.constant 0 : index
    %1 = vector.load %arg3[%c0_1, %c0_2] : memref<16x128xf32, #tpu.memory_space<vmem>>, vector<16x128xf32>
    tpu.vector_store %arg3[%c0_1, %c0_2], %0 {strides = array<i32>} : memref<16x128xf32, #tpu.memory_space<vmem>>, vector<16x128xf32>,
    return
  }
  func.func @transform_0(%arg0: i32, %arg1: memref<1xi32, #tpu.memory_space<smem>>) -> (i32, i32) {
    %c0 = arith.constant 0 : index
    %0 = memref.load %arg1[%c0] : memref<1xi32, #tpu.memory_space<smem>>
    %1 = arith.addi %0, %arg0 : i32
    %c0_i32 = arith.constant 0 : i32
    %c0_i32_0 = arith.constant 0 : i32
    return %1, %c0_i32 : i32, i32
  }
  func.func @transform_1(%arg0: i32, %arg1: memref<1xi32, #tpu.memory_space<smem>>) -> (i32, i32) {
    %c0_i32 = arith.constant 0 : i32
    %c0_i32_0 = arith.constant 0 : i32
    return %arg0, %c0_i32 : i32, i32
  }
}

</mosaic_0001>

<llo_original>
// kernel: tpu_custom_call.1
$region0: #{tpu_custom_call.1}
  #allocation0 [shape = 'u32[]', space=smem, size = 0x4, offset = 0x4, fixed_abs, tag = 'smem constant byte address 0x4 - core index']
  #allocation1 [shape = 'u32[144,128]{1,0:T(1,128)}', space=vmem, size = 0x12000, scoped, tag = 'internal scratch']
  #allocation2 [shape = 's32[1]{0}', space=sflag, size = 0x4, scoped, tag = 'scoped memory for tpu_custom_call.1']
  #allocation3 [shape = 's32[1]{0:T(128)S(6)}', space=smem, size = 0x200, scoped, tag = 'prefetched SMEM operand 0']
  %s0 = inlined_call_operand.<no memory space> [shape: s32[1], index: 0, kind: input, shape index: {}]
  %s1 = inlined_call_operand.hbm [shape: f32[64,128], index: 1, kind: input, shape index: {}]
  %s2 = inlined_call_operand.hbm [shape: f32[32,128], index: 2, kind: output, shape index: {}]
  %s3 = sld [smem:[#allocation0]]
  $region41: #{tpu_custom_call.1} parent=0
    _
  %s5 = ssub.s32 1, %s3
  %s6 = scalar_select 0, %s5, %s3
  %7 = sst [smem:[#allocation3]] %s0
  $region1: #{tpu_custom_call.1} parent=0
    #allocation4 [shape = 'u8[16384]{0}', space=vmem, size = 0x4000, scoped, tag = 'input window, operand 1']
    #allocation5 [shape = 's32[2]{0}', space=sflag, size = 0x8, scoped, tag = 'scoped memory for tpu_custom_call.1']
    #allocation6 [shape = 's32[2]{0}', space=sflag, size = 0x8, scoped, tag = 'scoped memory for tpu_custom_call.1']
    #allocation7 [shape = 'u8[16384]{0}', space=vmem, size = 0x4000, scoped, tag = 'output window, operand 0']
    %8 = vsyncpa [#allocation5], 0
    %s9 = scalar_lea.sflag [#allocation5], 1
    %10 = vsyncpa %s9, 0
    %11 = vsyncpa [#allocation6], 0
    %s12 = scalar_lea.sflag [#allocation6], 1
    %13 = vsyncpa %s12, 0
    loop: start=0, step=1, limit=4
    $region2: #{tpu_custom_call.1} parent=1 // loop_pre_header
      _
    $region3: #{tpu_custom_call.1} parent=1 // loop_header
      %s15 = sphi 0, %s19
      %p16 = scmp.ge.s32.totalorder %s15, 4
      %s29 = sphi 0, %s31
      %s32 = sphi 0, %s29
      %s33 = sphi 0, %s32
      %s49 = sphi 0, %s33
      %s55 = sphi 0, %s57
      %s58 = sphi 0, %s55
      %s59 = sphi 0, %s58
      %s75 = sphi 0, %s59
    $region4: #{tpu_custom_call.1} parent=1 // loop_header_branch
      %18 = sbr.rel (%p16) target = $region8
    $region5: #{tpu_custom_call.1} parent=1 // loop_body
      %s20 = ssub.s32 %s15, 1
      %s21 = ssub.s32 %s15, 2
      %s22 = sadd.s32 %s15, 1
      %s23 = sld [smem:[#allocation3]]
      %s24 = sadd.s32 %s23, %s15
      %s25 = sld [smem:[#allocation3]]
      %s26 = sadd.s32 %s25, %s22
      %s27 = ssub.s32 %s24, %s26
      %p28 = scmp.eq.s32.totalorder %s27, 0
      %s30 = sadd.s32 %s29, 1
      %s31 = scalar_select %p28, %s29, %s30
      %p34 = pneg %p28
      %p35 = scmp.eq.s32.totalorder %s15, 1
      %p36 = por %p34, %p35
      %p37 = scmp.ne.s32.totalorder %s29, %s32
      %p38 = scmp.eq.s32.totalorder %s15, 0
      %p39 = por %p37, %p38
      %p40 = scmp.ne.s32.totalorder %s29, %s32
      %p41 = scmp.eq.s32.totalorder %s20, 1
      %p42 = por %p40, %p41
      %p43 = scmp.ne.s32.totalorder %s32, %s33
      %p44 = scmp.eq.s32.totalorder %s20, 0
      %p45 = por %p43, %p44
      %p46 = scmp.ne.s32.totalorder %s32, %s33
      %p47 = scmp.eq.s32.totalorder %s21, 1
      %p48 = por %p46, %p47
      %p50 = scmp.ne.s32.totalorder %s33, %s49
      %p51 = scmp.eq.s32.totalorder %s21, 0
      %p52 = por %p50, %p51
      %s53 = ssub.s32 %s15, %s22
      %p54 = scmp.eq.s32.totalorder %s53, 0
      %s56 = sadd.s32 %s55, 1
      %s57 = scalar_select %p54, %s55, %s56
      %p60 = pneg %p54
      %p61 = scmp.eq.s32.totalorder %s15, 1
      %p62 = por %p60, %p61
      %p63 = scmp.ne.s32.totalorder %s55, %s58
      %p64 = scmp.eq.s32.totalorder %s15, 0
      %p65 = por %p63, %p64
      %p66 = scmp.ne.s32.totalorder %s55, %s58
      %p67 = scmp.eq.s32.totalorder %s20, 1
      %p68 = por %p66, %p67
      %p69 = scmp.ne.s32.totalorder %s58, %s59
      %p70 = scmp.eq.s32.totalorder %s20, 0
      %p71 = por %p69, %p70
      %p72 = scmp.ne.s32.totalorder %s58, %s59
      %p73 = scmp.eq.s32.totalorder %s21, 1
      %p74 = por %p72, %p73
      %p76 = scmp.ne.s32.totalorder %s59, %s75
      %p77 = scmp.eq.s32.totalorder %s21, 0
      %p78 = por %p76, %p77
      %p79 = scmp.le.s32.totalorder 1, %s15
      %p80 = scmp.lt.s32.totalorder %s15, 3
      %p81 = pnand %p79, %p80
      %p82 = pneg %p81
      // Predicated region
      $region9: #{tpu_custom_call.1} parent=5 // pred_check
        _
      $region10: #{tpu_custom_call.1} parent=5 // pred_check_branch
        %84 = sbr.rel (%p81) target = $region12
      $region11: #{tpu_custom_call.1} parent=5 // pred_region
        %s85 = ssub.s32 %s15, 1
      $region12: #{tpu_custom_call.1} parent=5 // pred_fallthru
        _
      %p86 = scmp.lt.s32.totalorder %s15, 2
      // Predicated region
      $region13: #{tpu_custom_call.1} parent=5 // pred_check
        %p87 = pneg %p86
      $region14: #{tpu_custom_call.1} parent=5 // pred_check_branch
        %89 = sbr.rel (%p87) target = $region16
      $region15: #{tpu_custom_call.1} parent=5 // pred_region
        // Predicated region
        $region17: #{tpu_custom_call.1} parent=15 // pred_check
          %p90 = pneg %p39
        $region18: #{tpu_custom_call.1} parent=15 // pred_check_branch
          %92 = sbr.rel (%p90) target = $region20
        $region19: #{tpu_custom_call.1} parent=15 // pred_region
          %s93 = sand.u32 %s29, 1
          %s94 = scalar_lea.sflag [#allocation5], %s93
          %s95 = sand.u32 %s29, 1
          %s96 = smul.addr %s95, 16
          %s97 = scalar_lea.vmem [#allocation4], %s96
          %s98 = sld [smem:[#allocation3]]
          %s99 = sadd.s32 %s98, %s15
          %s100 = smul.u32 2, %s99
          %s102 = ssub.s32 256, 256
          %103 = vsyncadd %s94, %s102
          %s104 = smul.addr %s100, 128
          %s105 = scalar_lea.hbm %s1, %s104
          %s106 = sshll.u32 %s97, 4
          %s107 = int_to_ptr.vmem [resolvable:$true] %s106
          %112 = dma.hbm_to_vmem [thread:$0]  %s105, 256, %s107, %s94, 128, 128, 8
        $region20: #{tpu_custom_call.1} parent=15 // pred_fallthru
          _
      $region16: #{tpu_custom_call.1} parent=5 // pred_fallthru
        _
      %p113 = scmp.le.s32.totalorder 1, %s15
      %p114 = scmp.lt.s32.totalorder %s15, 3
      %p115 = pnand %p113, %p114
      %p116 = pneg %p115
      // Predicated region
      $region21: #{tpu_custom_call.1} parent=5 // pred_check
        _
      $region22: #{tpu_custom_call.1} parent=5 // pred_check_branch
        %118 = sbr.rel (%p115) target = $region24
      $region23: #{tpu_custom_call.1} parent=5 // pred_region
        %s119 = ssub.s32 %s15, 1
        %s120 = sand.u32 %s32, 1
        %s121 = scalar_lea.sflag [#allocation5], %s120
        %s122 = sand.u32 %s32, 1
        %s123 = smul.addr %s122, 16
        %s124 = scalar_lea.vmem [#allocation4], %s123
        // Predicated region
        $region25: #{tpu_custom_call.1} parent=23 // pred_check
          %p125 = pneg %p45
        $region26: #{tpu_custom_call.1} parent=23 // pred_check_branch
          %127 = sbr.rel (%p125) target = $region28
        $region27: #{tpu_custom_call.1} parent=23 // pred_region
          %128 = dma.done %s121, 256
        $region28: #{tpu_custom_call.1} parent=23 // pred_fallthru
          _
        %s129 = sand.u32 %s32, 1
        %s130 = scalar_lea.sflag [#allocation5], %s129
        %s131 = sand.u32 %s32, 1
        %s132 = smul.addr %s131, 16
        %s133 = scalar_lea.vmem [#allocation4], %s132
        %p134 = pneg %p45
        %p135 = pneg %p42
        %p136 = pneg %p71
        %p137 = pneg %p68
        %s138 = sand.u32 %s58, 1
        %s139 = scalar_lea.sflag [#allocation6], %s138
        %s140 = sand.u32 %s58, 1
        %s141 = smul.addr %s140, 16
        %s142 = scalar_lea.vmem [#allocation7], %s141
        %s143 = sld [smem:[#allocation3]]
        %s144 = sadd.s32 %s143, %s20
        %s145 = smul.u32 2, %s144
        %s146 = smul.u32 2, %s20
        %v147 = vld [vmem:[%s124] sm:$0xff]
        %v148 = vld [vmem:[%s124 + $0x8] sm:$0xff]
        %149 = vst [vmem:[%s142] sm:$0xff] %v147
        %150 = vst [vmem:[%s142 + $0x8] sm:$0xff] %v148
        %s151 = sand.u32 %s58, 1
        %s152 = scalar_lea.sflag [#allocation6], %s151
        %s153 = sand.u32 %s58, 1
        %s154 = smul.addr %s153, 16
        %s155 = scalar_lea.vmem [#allocation7], %s154
        // Predicated region
        $region29: #{tpu_custom_call.1} parent=23 // pred_check
          %p156 = pneg %p68
        $region30: #{tpu_custom_call.1} parent=23 // pred_check_branch
          %158 = sbr.rel (%p156) target = $region32
        $region31: #{tpu_custom_call.1} parent=23 // pred_region
          %s159 = smul.u32 2, %s20
          %s161 = ssub.s32 256, 256
          %162 = vsyncadd %s152, %s161
          %s163 = smul.addr %s159, 128
          %s164 = scalar_lea.hbm %s2, %s163
          %s165 = sshll.u32 %s155, 4
          %s166 = int_to_ptr.vmem [resolvable:$true] %s165
          %171 = dma.vmem_to_hbm [thread:$0]  %s166, 256, %s164, %s152, 128, 128, 8
        $region32: #{tpu_custom_call.1} parent=23 // pred_fallthru
          _
      $region24: #{tpu_custom_call.1} parent=5 // pred_fallthru
        _
      %p172 = scmp.le.s32.totalorder 2, %s15
      // Predicated region
      $region33: #{tpu_custom_call.1} parent=5 // pred_check
        %p173 = pneg %p172
      $region34: #{tpu_custom_call.1} parent=5 // pred_check_branch
        %175 = sbr.rel (%p173) target = $region36
      $region35: #{tpu_custom_call.1} parent=5 // pred_region
        %s176 = ssub.s32 %s15, 2
        // Predicated region
        $region37: #{tpu_custom_call.1} parent=35 // pred_check
          %p177 = pneg %p74
        $region38: #{tpu_custom_call.1} parent=35 // pred_check_branch
          %179 = sbr.rel (%p177) target = $region40
        $region39: #{tpu_custom_call.1} parent=35 // pred_region
          %s180 = sand.u32 %s59, 1
          %s181 = scalar_lea.sflag [#allocation6], %s180
          %s182 = sand.u32 %s59, 1
          %s183 = smul.addr %s182, 16
          %s184 = scalar_lea.vmem [#allocation7], %s183
          %185 = dma.done %s181, 256
        $region40: #{tpu_custom_call.1} parent=35 // pred_fallthru
          _
      $region36: #{tpu_custom_call.1} parent=5 // pred_fallthru
        _
    $region6: #{tpu_custom_call.1} parent=1 // loop_footer
      %s19 = sadd.s32 1, %s15
    $region7: #{tpu_custom_call.1} parent=1 // loop_footer_branch
      %14 = sbr.rel target = $region3
    $region8: #{tpu_custom_call.1} parent=1 // loop_exit
      _
    %186 = vsyncpa [#allocation5], 1
    %s187 = scalar_lea.sflag [#allocation5], 1
    %188 = vsyncpa %s187, 1
    %189 = vsyncpa [#allocation6], 1
    %s190 = scalar_lea.sflag [#allocation6], 1
    %191 = vsyncpa %s190, 1

</llo_original>
